<compile_context>
chip_gen: v5e
topology: v5e:2x2
jax: 0.10.0
libtpu: 0.0.40
codegen_flags: <defaults>
</compile_context>

<pallas_src>
import jax
import jax.numpy as jnp
from jax.experimental import pallas as pl
from jax.experimental.pallas import tpu as pltpu


def _dlora_kernel(x_ref, at_ref, bt_ref, bias_ref, o_ref):
    # h = x @ A^T  -> (TILE_M, r), f32 accumulation on the MXU.
    h = jnp.dot(x_ref[...], at_ref[...], preferred_element_type=jnp.float32)
    # Feed the second matmul in the weight dtype (no-op for f32 weights).
    h = h.astype(bt_ref.dtype)
    # y = h @ B^T + bias  -> (TILE_M, out_pad)
    y = jnp.dot(h, bt_ref[...], preferred_element_type=jnp.float32)
    o_ref[...] = (y + bias_ref[...].astype(jnp.float32)).astype(o_ref.dtype)


def _round_up(n, m):
    return ((n + m - 1) // m) * m


def _choose_tile_m(m, in_f, out_f_pad, dtype_bytes, vmem_budget=24 * 1024 * 1024):
    """Pick TILE_M so double-buffered x-in + y-out tiles fit in ~vmem_budget."""
    per_row = 2 * (in_f + out_f_pad) * dtype_bytes  # 2x for double buffering
    tile = vmem_budget // max(per_row, 1)
    tile = max(8, min(int(tile), 1024))
    tile = (tile // 8) * 8
    # Never exceed the (8-aligned) problem size.
    tile = min(tile, _round_up(m, 8))
    return max(8, (tile // 8) * 8)


def dlora_forward(x, a_weight, b_weight, b_bias):
    """x: (..., in_features); a_weight: (r, in); b_weight: (out, r); b_bias: (out,)."""
    in_features = a_weight.shape[1]
    out_features = b_weight.shape[0]
    r = a_weight.shape[0]

    lead_shape = x.shape[:-1]
    m = 1
    for d in lead_shape:
        m *= d
    x2d = x.reshape(m, in_features)

    dtype_bytes = jnp.dtype(x.dtype).itemsize
    w_bytes = jnp.dtype(a_weight.dtype).itemsize

    # Lane-dense output: pad out_features to a multiple of 128 (padding the tiny
    # weights/bias is cheap; padding is sliced off after the kernel).
    out_pad = _round_up(out_features, 128)

    tile_m = _choose_tile_m(m, in_features, out_pad, dtype_bytes)
    m_pad = _round_up(m, tile_m)
    if m_pad != m:
        x2d = jnp.pad(x2d, ((0, m_pad - m), (0, 0)))

    a_t = a_weight.T                       # (in_features, r)   -- VMEM resident
    b_t = b_weight.T                       # (r, out_features)  -- VMEM resident
    bias2d = b_bias.reshape(1, out_features)
    if out_pad != out_features:
        b_t = jnp.pad(b_t, ((0, 0), (0, out_pad - out_features)))
        bias2d = jnp.pad(bias2d, ((0, 0), (0, out_pad - out_features)))

    grid = (m_pad // tile_m,)

    # Advisory cost hint for XLA scheduling around the custom call.
    cost = pl.CostEstimate(
        flops=2 * m_pad * r * (in_features + out_pad),
        transcendentals=0,
        bytes_accessed=(m_pad * (in_features + out_pad)) * dtype_bytes
        + (in_features * r + r * out_pad + out_pad) * w_bytes,
    )

    # Double-buffered streamed tiles + resident weights, with 2x headroom,
    # clamped to a range that is safe on v7x (64 MiB/TC physical).
    vmem_needed = (
        2 * tile_m * (in_features + out_pad) * dtype_bytes
        + (in_features * r + r * out_pad + out_pad) * w_bytes
    )
    vmem_limit = int(min(max(2 * vmem_needed, 16 * 1024 * 1024), 64 * 1024 * 1024))

    out2d = pl.pallas_call(
        _dlora_kernel,
        out_shape=jax.ShapeDtypeStruct((m_pad, out_pad), x.dtype),
        grid_spec=pl.GridSpec(
            grid=grid,
            in_specs=[
                pl.BlockSpec((tile_m, in_features), lambda i: (i, 0)),   # stream x
                pl.BlockSpec((in_features, r), lambda i: (0, 0)),        # resident A^T
                pl.BlockSpec((r, out_pad), lambda i: (0, 0)),            # resident B^T
                pl.BlockSpec((1, out_pad), lambda i: (0, 0)),            # resident bias
            ],
            out_specs=pl.BlockSpec((tile_m, out_pad), lambda i: (i, 0)),  # stream y
        ),
        compiler_params=pltpu.CompilerParams(
            dimension_semantics=("parallel",),
            vmem_limit_bytes=vmem_limit,
        ),
        cost_estimate=cost,
    )(x2d, a_t, b_t, bias2d)

    out2d = out2d[:m, :out_features]
    return out2d.reshape(*lead_shape, out_features)


if __name__ == "__main__":
    # Module config (mirrors DLoRA.__init__ with defaults r=1, rank_limit_factor=3):
    in_features = 32
    out_features = 32
    rank_limit = min(in_features, out_features) // 3   # = 10
    r = min(1, rank_limit)                              # = 1

    key = jax.random.PRNGKey(0)
    k_x, k_a, k_b, k_bias = jax.random.split(key, 4)

    # Deterministic synthetic parameter init (shapes match nn.Linear weights).
    # NOTE: with first=False the module would zero a.weight; small random values
    # are used so the kernel exercises the full matmul chain.
    a_weight = jax.random.normal(k_a, (r, in_features), dtype=jnp.float32) * 0.1
    b_weight = jax.random.normal(k_b, (out_features, r), dtype=jnp.float32)
    b_bias = jax.random.normal(k_bias, (out_features,), dtype=jnp.float32) * 0.1

    # Input: batch=2, seq=8, hidden=in_features
    x = jax.random.normal(k_x, (2, 8, in_features), dtype=jnp.float32)

    out = dlora_forward(x, a_weight, b_weight, b_bias)
    out = jax.block_until_ready(out)

    # Pure-JAX reference check of the same math.
    ref = (x.reshape(-1, in_features) @ a_weight.T) @ b_weight.T + b_bias
    ref = ref.reshape(2, 8, out_features)
    assert out.shape == (2, 8, out_features)
    assert jnp.allclose(out, ref, atol=1e-5, rtol=1e-5)

    # TODO(synk): Inc_ScoreTracker / gradient-hook EMA tracking is training-time
    # state (backward hook), not part of the forward pass; not implemented.
    print("KERNEL_OK")
</pallas_src>

<mosaic_0001>
module attributes {stable_mosaic.version = 11 : i64} {
  func.func @_dlora_kernel(%arg0: i32, %arg1: memref<16x32xf32, #tpu.memory_space<vmem>>, %arg2: memref<32x1xf32, #tpu.memory_space<vmem>>, %arg3: memref<1x128xf32, #tpu.memory_space<vmem>>, %arg4: memref<1x128xf32, #tpu.memory_space<vmem>>, %arg5: memref<16x128xf32, #tpu.memory_space<vmem>>) attributes {dimension_semantics = [#tpu.dimension_semantics<parallel>], iteration_bounds = array<i64: 1>, scalar_prefetch = 0 : i64, scratch_operands = 0 : i64, tpu.core_type = #tpu.core_type<tc>, window_params = [{transform_indices = @transform_0, window_bounds = array<i64: 16, 32>}, {pipeline_mode = #tpu.pipeline_mode<synchronous>, transform_indices = @transform_1, window_bounds = array<i64: 32, 1>}, {pipeline_mode = #tpu.pipeline_mode<synchronous>, transform_indices = @transform_2, window_bounds = array<i64: 1, 128>}, {pipeline_mode = #tpu.pipeline_mode<synchronous>, transform_indices = @transform_3, window_bounds = array<i64: 1, 128>}, {transform_indices = @transform_4, window_bounds = array<i64: 16, 128>}]} {
    %c0 = arith.constant 0 : index
    %c0_0 = arith.constant 0 : index
    %0 = vector.load %arg1[%c0, %c0_0] : memref<16x32xf32, #tpu.memory_space<vmem>>, vector<16x32xf32>
    %c0_1 = arith.constant 0 : index
    %c0_2 = arith.constant 0 : index
    %1 = vector.load %arg2[%c0_1, %c0_2] : memref<32x1xf32, #tpu.memory_space<vmem>>, vector<32x1xf32>
    %cst = arith.constant dense<0.000000e+00> : vector<16x1xf32>
    %2 = tpu.matmul %0, %1, %cst {dimension_numbers = #tpu.dot_dimension_numbers<[1], [0], [0], [1], [0, 0, 1, 1], [], []>} : vector<16x32xf32>, vector<32x1xf32>, vector<16x1xf32> -> vector<16x1xf32>
    %c0_3 = arith.constant 0 : index
    %c0_4 = arith.constant 0 : index
    %3 = vector.load %arg3[%c0_3, %c0_4] : memref<1x128xf32, #tpu.memory_space<vmem>>, vector<1x128xf32>
    %cst_5 = arith.constant dense<0.000000e+00> : vector<16x128xf32>
    %4 = tpu.matmul %2, %3, %cst_5 {dimension_numbers = #tpu.dot_dimension_numbers<[1], [0], [0], [1], [0, 0, 1, 1], [], []>} : vector<16x1xf32>, vector<1x128xf32>, vector<16x128xf32> -> vector<16x128xf32>
    %c0_6 = arith.constant 0 : index
    %c0_7 = arith.constant 0 : index
    %5 = vector.load %arg4[%c0_6, %c0_7] : memref<1x128xf32, #tpu.memory_space<vmem>>, vector<1x128xf32>
    %6 = vector.broadcast %5 : vector<1x128xf32> to vector<16x128xf32>
    %7 = arith.addf %4, %6 : vector<16x128xf32>
    %c0_8 = arith.constant 0 : index
    %c0_9 = arith.constant 0 : index
    %8 = vector.load %arg5[%c0_8, %c0_9] : memref<16x128xf32, #tpu.memory_space<vmem>>, vector<16x128xf32>
    tpu.vector_store %arg5[%c0_8, %c0_9], %7 {strides = array<i32>} : memref<16x128xf32, #tpu.memory_space<vmem>>, vector<16x128xf32>,
    return
  }
  func.func @transform_0(%arg0: i32) -> (i32, i32) {
    %c0_i32 = arith.constant 0 : i32
    %c0_i32_0 = arith.constant 0 : i32
    return %arg0, %c0_i32 : i32, i32
  }
  func.func @transform_1(%arg0: i32) -> (i32, i32) {
    %c0_i32 = arith.constant 0 : i32
    %c0_i32_0 = arith.constant 0 : i32
    %c0_i32_1 = arith.constant 0 : i32
    return %c0_i32, %c0_i32_0 : i32, i32
  }
  func.func @transform_2(%arg0: i32) -> (i32, i32) {
    %c0_i32 = arith.constant 0 : i32
    %c0_i32_0 = arith.constant 0 : i32
    %c0_i32_1 = arith.constant 0 : i32
    return %c0_i32, %c0_i32_0 : i32, i32
  }
  func.func @transform_3(%arg0: i32) -> (i32, i32) {
    %c0_i32 = arith.constant 0 : i32
    %c0_i32_0 = arith.constant 0 : i32
    %c0_i32_1 = arith.constant 0 : i32
    return %c0_i32, %c0_i32_0 : i32, i32
  }
  func.func @transform_4(%arg0: i32) -> (i32, i32) {
    %c0_i32 = arith.constant 0 : i32
    %c0_i32_0 = arith.constant 0 : i32
    return %arg0, %c0_i32 : i32, i32
  }
}

</mosaic_0001>

<llo_original>
// kernel: tpu_custom_call.1
$region0: #{tpu_custom_call.1}
  #allocation0 [shape = 'u32[]', space=smem, size = 0x4, offset = 0x4, fixed_abs, tag = 'smem constant byte address 0x4 - core index']
  #allocation1 [shape = 'u32[72,128]{1,0:T(1,128)}', space=vmem, size = 0x9000, scoped, tag = 'internal scratch']
  %s0 = inlined_call_operand.vmem [shape: f32[16,32], index: 0, kind: input, shape index: {}]
  %s1 = inlined_call_operand.vmem [shape: f32[32,1], index: 1, kind: input, shape index: {}]
  %s2 = inlined_call_operand.vmem [shape: f32[1,128], index: 2, kind: input, shape index: {}]
  %s3 = inlined_call_operand.vmem [shape: f32[1,128], index: 3, kind: input, shape index: {}]
  %s4 = inlined_call_operand.hbm [shape: f32[16,128], index: 4, kind: output, shape index: {}]
  %s5 = sld [smem:[#allocation0]]
  $region26: #{tpu_custom_call.1} parent=0
    _
  %s7 = ssub.s32 1, %s5
  %s8 = scalar_select 0, %s7, %s5
  $region1: #{tpu_custom_call.1} parent=0
    #allocation2 [shape = 'u8[8192]{0}', space=vmem, size = 0x2000, scoped, tag = 'output window, operand 0, single buffered']
    #allocation3 [shape = 's32[1]{0}', space=sflag, size = 0x4, scoped, tag = 'scoped memory for tpu_custom_call.1']
    %9 = vsyncpa [#allocation3], 0
    // Predicated region
    $region2: #{tpu_custom_call.1} parent=1 // pred_check
      _
    $region3: #{tpu_custom_call.1} parent=1 // pred_check_branch
      %11 = sbr.rel (0) target = $region5
    $region4: #{tpu_custom_call.1} parent=1 // pred_region
      _
    $region5: #{tpu_custom_call.1} parent=1 // pred_fallthru
      _
    // Predicated region
    $region6: #{tpu_custom_call.1} parent=1 // pred_check
      _
    $region7: #{tpu_custom_call.1} parent=1 // pred_check_branch
      %13 = sbr.rel (0) target = $region9
    $region8: #{tpu_custom_call.1} parent=1 // pred_region
      _
    $region9: #{tpu_custom_call.1} parent=1 // pred_fallthru
      _
    // Predicated region
    $region10: #{tpu_custom_call.1} parent=1 // pred_check
      _
    $region11: #{tpu_custom_call.1} parent=1 // pred_check_branch
      %15 = sbr.rel (0) target = $region13
    $region12: #{tpu_custom_call.1} parent=1 // pred_region
      _
    $region13: #{tpu_custom_call.1} parent=1 // pred_fallthru
      _
    // Predicated region
    $region14: #{tpu_custom_call.1} parent=1 // pred_check
      _
    $region15: #{tpu_custom_call.1} parent=1 // pred_check_branch
      %17 = sbr.rel (0) target = $region17
    $region16: #{tpu_custom_call.1} parent=1 // pred_region
      _
    $region17: #{tpu_custom_call.1} parent=1 // pred_fallthru
      _
    %v18 = vld [vmem:[%s0] sm:$0xff]
    %v19 = vld [vmem:[%s0 + $0x8] sm:$0xff]
    %v20 = vld [vmem:[%s1] sm:$0xff]
    %v21 = vld [vmem:[%s1 + $0x8] sm:$0xff]
    %v22 = vld [vmem:[%s1 + $0x10] sm:$0xff]
    %v23 = vld [vmem:[%s1 + $0x18] sm:$0xff]
    %vm24 = vcmask 261120
    %v26 = vsel %vm24, %v18, 0
    %v29 = vsel %vm24, %v19, 0
    %31 = vmatpush.msra.mxu0 0.0
    %32 = vmatpush.msra.mxu0 0.0
    %33 = vmatpush.msra.mxu0 0.0
    %34 = vmatpush.msra.mxu0 0.0
    %35 = vmatpush.msra.mxu0 0.0
    %36 = vmatpush.msra.mxu0 0.0
    %37 = vmatpush.msra.mxu0 0.0
    %38 = vmatpush.msra.mxu0 0.0
    %39 = vmatpush.msra.mxu0 0.0
    %40 = vmatpush.msra.mxu0 0.0
    %41 = vmatpush.msra.mxu0 0.0
    %42 = vmatpush.msra.mxu0 0.0
    %43 = vmatpush.msra.mxu0 %v23
    %44 = vmatpush.msra.mxu0 %v22
    %45 = vmatpush.msra.mxu0 %v21
    %46 = vmatpush.msra.mxu0 %v20
    %47 = vmatmul.f32.gmra.mxu0 %v26
    %v48 = vpop.f32.mrf.mxu0
    %v49 = vadd.f32 0.0, %v48
    %50 = vmatmul.f32.gmra.mxu0 %v29
    %v51 = vpop.f32.mrf.mxu0
    %v52 = vadd.f32 0.0, %v51
    %53 = vdwg.mxu0
    %v54 = vld [vmem:[%s2] sm:$0x1]
    %v55 = vld [vmem:[%s3] sm:$0x1]
    %v57 = vperm.slane %v55, 0
    %vm59 = vcmask 7168
    %v61 = vsel %vm59, %v49, 0
    %v64 = vsel %vm59, %v52, 0
    %vm66 = vcmask 1040384
    %v68 = vsel %vm66, %v54, 0
    %70 = vmatpush.msra.mxu0 0.0
    %71 = vmatpush.msra.mxu0 0.0
    %72 = vmatpush.msra.mxu0 0.0
    %73 = vmatpush.msra.mxu0 0.0
    %74 = vmatpush.msra.mxu0 0.0
    %75 = vmatpush.msra.mxu0 0.0
    %76 = vmatpush.msra.mxu0 0.0
    %77 = vmatpush.msra.mxu0 0.0
    %78 = vmatpush.msra.mxu0 0.0
    %79 = vmatpush.msra.mxu0 0.0
    %80 = vmatpush.msra.mxu0 0.0
    %81 = vmatpush.msra.mxu0 0.0
    %82 = vmatpush.msra.mxu0 0.0
    %83 = vmatpush.msra.mxu0 0.0
    %84 = vmatpush.msra.mxu0 0.0
    %85 = vmatpush.msra.mxu0 %v68
    %86 = vmatmul.f32.gmra.mxu0 %v61
    %v87 = vpop.f32.mrf.mxu0
    %v88 = vadd.f32 %v57, %v87
    %89 = vmatmul.f32.gmra.mxu0 %v64
    %v90 = vpop.f32.mrf.mxu0
    %v91 = vadd.f32 %v57, %v90
    %92 = vdwg.mxu0
    %93 = vst [vmem:[#allocation2] sm:$0xff] %v88
    %94 = vst [vmem:[#allocation2 + $0x8] sm:$0xff] %v91
    // Predicated region
    $region18: #{tpu_custom_call.1} parent=1 // pred_check
      _
    $region19: #{tpu_custom_call.1} parent=1 // pred_check_branch
      %96 = sbr.rel (0) target = $region21
    $region20: #{tpu_custom_call.1} parent=1 // pred_region
      %98 = vsyncadd [#allocation3], 0
      %s99 = sshll.u32 [#allocation2], 4
      %s100 = int_to_ptr.vmem [resolvable:$true] %s99
      %s101 = sshll.u32 %s4, 4
      %s102 = int_to_ptr.hbm [resolvable:$true] %s101
      %107 = dma.vmem_to_hbm [thread:$0]  %s100, 256, %s102, [#allocation3], 128, 128, 8
    $region21: #{tpu_custom_call.1} parent=1 // pred_fallthru
      _
    // Predicated region
    $region22: #{tpu_custom_call.1} parent=1 // pred_check
      _
    $region23: #{tpu_custom_call.1} parent=1 // pred_check_branch
      %109 = sbr.rel (0) target = $region25
    $region24: #{tpu_custom_call.1} parent=1 // pred_region
      %111 = dma.done [#allocation3], 256
    $region25: #{tpu_custom_call.1} parent=1 // pred_fallthru
      _
    %112 = vsyncpa [#allocation3], 1

</llo_original>
